<compile_context>
chip_gen: v6e
topology: v6e:2x2x1
jax: 0.10.0
libtpu: 0.0.40
codegen_flags: <defaults>
</compile_context>

<pallas_src>
import math

import jax
import jax.numpy as jnp
from jax import lax
from jax.experimental import pallas as pl
from jax.experimental.pallas import tpu as pltpu

_LANE = 128
_SUBLANE = 8


def _make_kernel(confidence, off_value, tile_n, tile_c, n_rows, n_cols):
    confidence = float(confidence)
    off_value = float(off_value)
    mask_rows = (n_rows % tile_n) != 0       # ragged last row tile
    mask_cols = (n_cols % tile_c) != 0       # ragged last column tile

    def kernel(x_ref, tgt_ref, out_ref, acc_ref):
        i = pl.program_id(0)                 # row-tile index ("parallel")
        j = pl.program_id(1)                 # column-tile index ("arbitrary")

        @pl.when(j == 0)
        def _():
            acc_ref[...] = jnp.zeros_like(acc_ref)

        x = x_ref[...].astype(jnp.float32)   # (tile_n, tile_c); bf16 friendly
        tgt = tgt_ref[...]                   # (tile_n, 1) int32, padded with -1
        col = lax.broadcasted_iota(jnp.int32, (tile_n, tile_c), 1)
        # Column offset applied to the small (tile_n,1) operand, not the tile.
        is_tgt = col == (tgt - j * tile_c)

        if off_value != 0.0:
            # Fused single reduction: weight every element, one reduce tree.
            w = jnp.where(is_tgt, confidence, off_value)
            prod = x * w
            valid = None
            if mask_rows:
                row = lax.broadcasted_iota(jnp.int32, (tile_n, 1), 0)
                valid = row < (n_rows - i * tile_n)
            if mask_cols:
                cvalid = col < (n_cols - j * tile_c)
                valid = cvalid if valid is None else (valid & cvalid)
            if valid is not None:
                # select (not multiply) so Inf/NaN garbage in out-of-bounds
                # edge-tile reads can never reach the sum.
                prod = jnp.where(valid, prod, 0.0)
            final_scale = 1.0
        else:
            # smoothing == 0: only target columns contribute; padded targets
            # are -1 and never match, so no edge masks are needed at all.
            prod = jnp.where(is_tgt, x, 0.0)
            final_scale = confidence

        # Row-only partial reduce (inter-vreg VALU adds); defer the cross-lane
        # reduce and the (1,1) store to the last column step.
        acc_ref[...] += jnp.sum(prod, axis=0, keepdims=True)

        @pl.when(j == pl.num_programs(1) - 1)
        def _():
            total = jnp.sum(acc_ref[...]) * final_scale
            out_ref[...] = jnp.zeros_like(out_ref) + total

    return kernel


def _choose_tiles(n, c, itemsize):
    """Byte-budgeted, lane-dense x block (~4 MiB in the input dtype)."""
    target_bytes = 4 * 1024 * 1024

    if c % _LANE == 0:
        if c * itemsize * _SUBLANE <= target_bytes:
            tile_c = c                      # full rows -> fully contiguous DMA
        else:
            tile_c = 2048                   # lane-dense; tail tile masked
    else:
        if c <= 2048:
            tile_c = c                      # small unaligned C: full extent
        else:
            tile_c = 2048                   # 128-multiple; mask the C tail

    tile_n = target_bytes // (tile_c * itemsize)
    tile_n = max(_SUBLANE, min(1024, (tile_n // _SUBLANE) * _SUBLANE))
    n_ceil = ((n + _SUBLANE - 1) // _SUBLANE) * _SUBLANE
    tile_n = min(tile_n, n_ceil)
    return tile_n, tile_c


def label_smoothing_loss(x, target, size, smoothing=0.0):
    """Pallas equivalent of LabelSmoothing.forward (KLDivLoss, sum reduction).

    x: (N, size) float log-probabilities (f32 or bf16); target: (N,) int class
    indices.  Returns a scalar f32 loss.
    """
    assert x.ndim == 2 and x.shape[1] == size
    n, c = x.shape
    confidence = 1.0 - smoothing
    off_value = (smoothing / (size - 1)) if size > 1 else 0.0

    # Constant sum(q*log q) term, folded at Python time (0*log0 := 0).
    const = 0.0
    if confidence > 0.0:
        const += n * confidence * math.log(confidence)
    if off_value > 0.0:
        const += n * (size - 1) * off_value * math.log(off_value)

    itemsize = x.dtype.itemsize
    tile_n, tile_c = _choose_tiles(n, c, itemsize)
    grid_rows = pl.cdiv(n, tile_n)
    grid_cols = pl.cdiv(c, tile_c)

    # Pad ONLY the tiny target column (never x): -1 never matches any class,
    # so garbage rows of the ragged last x tile can never be selected.
    tgt2d = target.astype(jnp.int32).reshape(n, 1)
    n_pad = grid_rows * tile_n
    if n_pad != n:
        tgt2d = jnp.pad(tgt2d, ((0, n_pad - n), (0, 0)), constant_values=-1)

    # VMEM budget: double-buffered input block + f32 elementwise temporaries.
    block_in_bytes = tile_n * tile_c * itemsize
    block_f32_bytes = tile_n * tile_c * 4
    vmem_limit = 2 * block_in_bytes + 4 * block_f32_bytes + (2 << 20)
    vmem_limit = int(min(48 * 1024 * 1024, max(16 * 1024 * 1024, vmem_limit)))

    partials = pl.pallas_call(
        _make_kernel(confidence, off_value, tile_n, tile_c, n, c),
        out_shape=jax.ShapeDtypeStruct((grid_rows, 1), jnp.float32),
        grid=(grid_rows, grid_cols),
        in_specs=[
            pl.BlockSpec((tile_n, tile_c), lambda i, j: (i, j)),
            pl.BlockSpec((tile_n, 1), lambda i, j: (i, 0)),
        ],
        out_specs=pl.BlockSpec((1, 1), lambda i, j: (i, 0)),
        scratch_shapes=[pltpu.VMEM((1, tile_c), jnp.float32)],
        compiler_params=pltpu.CompilerParams(
            # Per-row-tile outputs -> row axis is safely parallel (megacore);
            # column axis carries the resident scratch accumulator.
            dimension_semantics=("parallel", "arbitrary"),
            vmem_limit_bytes=vmem_limit,
        ),
        cost_estimate=pl.CostEstimate(
            flops=4 * n * c,
            transcendentals=0,
            bytes_accessed=n * c * itemsize + n_pad * 4 + grid_rows * 4,
        ),
    )(x, tgt2d)

    return jnp.float32(const) - jnp.sum(partials)


def _reference(x, target, size, smoothing):
    # Pure-JAX reference mirroring the PyTorch module (true_dist + KLDivLoss).
    confidence = 1.0 - smoothing
    off_value = (smoothing / (size - 1)) if size > 1 else 0.0
    n = x.shape[0]
    x = x.astype(jnp.float32)
    true_dist = jnp.full((n, size), off_value, dtype=jnp.float32)
    true_dist = true_dist.at[jnp.arange(n), target].set(confidence)
    safe_q = jnp.where(true_dist > 0, true_dist, 1.0)
    kl = jnp.where(true_dist > 0, true_dist * (jnp.log(safe_q) - x), 0.0)
    return jnp.sum(kl)


if __name__ == "__main__":
    key = jax.random.PRNGKey(0)
    # Small shapes exercising every specialization path:
    #  (12, 40)    : C < 128 full-extent lane block, ragged row tile
    #  (20, 2100)  : masked last column tile AND masked last row tile
    #  (16, 256)   : bf16 input, lane-aligned C, no masking
    configs = [
        (12, 40, jnp.float32),
        (20, 2100, jnp.float32),
        (16, 256, jnp.bfloat16),
    ]
    for idx, (N, SIZE, dt) in enumerate(configs):
        k1, k2 = jax.random.split(jax.random.fold_in(key, idx))
        logits = jax.random.normal(k1, (N, SIZE), dtype=jnp.float32)
        xlp = jax.nn.log_softmax(logits, axis=-1).astype(dt)   # log-probs
        target = jax.random.randint(k2, (N,), 0, SIZE, dtype=jnp.int32)
        for smoothing in (0.1, 0.0):
            loss = jax.block_until_ready(
                label_smoothing_loss(xlp, target, SIZE, smoothing))
            ref = _reference(xlp, target, SIZE, smoothing)
            assert jnp.allclose(loss, ref, rtol=1e-4, atol=5e-3), (
                N, SIZE, dt, smoothing, loss, ref)

    # TODO(synk): the PyTorch module also caches self.true_dist as a side
    # effect; the full smoothed distribution is never materialized here
    # (it is folded into per-element weights and a trace-time constant).
    print("KERNEL_OK")
</pallas_src>

<mosaic_0001>
module attributes {stable_mosaic.version = 11 : i64} {
  func.func @kernel(%arg0: i32, %arg1: i32, %arg2: memref<16x40xf32, #tpu.memory_space<vmem>>, %arg3: memref<16x1xi32, #tpu.memory_space<vmem>>, %arg4: memref<1x1xf32, #tpu.memory_space<vmem>>, %arg5: memref<1x40xf32, #tpu.memory_space<vmem>>) attributes {dimension_semantics = [#tpu.dimension_semantics<parallel>, #tpu.dimension_semantics<arbitrary>], iteration_bounds = array<i64: 1, 1>, scalar_prefetch = 0 : i64, scratch_operands = 1 : i64, tpu.core_type = #tpu.core_type<tc>, window_params = [{transform_indices = @transform_0, window_bounds = array<i64: 16, 40>}, {transform_indices = @transform_1, window_bounds = array<i64: 16, 1>}, {transform_indices = @transform_2, window_bounds = array<i64: 1, 1>}]} {
    %c0_i32 = arith.constant 0 : i32
    %0 = arith.cmpi eq, %arg1, %c0_i32 : i32
    %1 = arith.extui %0 : i1 to i32
    %c0_i32_0 = arith.constant 0 : i32
    %2 = arith.cmpi ne, %1, %c0_i32_0 : i32
    scf.if %2 {
      %cst_13 = arith.constant 0.000000e+00 : f32
      %32 = vector.broadcast %cst_13 : f32 to vector<1x40xf32>
      %c0_14 = arith.constant 0 : index
      %c0_15 = arith.constant 0 : index
      %33 = vector.load %arg5[%c0_14, %c0_15] : memref<1x40xf32, #tpu.memory_space<vmem>>, vector<1x40xf32>
      tpu.vector_store %arg5[%c0_14, %c0_15], %32 {strides = array<i32>} : memref<1x40xf32, #tpu.memory_space<vmem>>, vector<1x40xf32>,
    } else {
    }
    %c0 = arith.constant 0 : index
    %c0_1 = arith.constant 0 : index
    %3 = vector.load %arg2[%c0, %c0_1] : memref<16x40xf32, #tpu.memory_space<vmem>>, vector<16x40xf32>
    %c0_2 = arith.constant 0 : index
    %c0_3 = arith.constant 0 : index
    %4 = vector.load %arg3[%c0_2, %c0_3] : memref<16x1xi32, #tpu.memory_space<vmem>>, vector<16x1xi32>
    %5 = tpu.iota {dimensions = array<i32: 1>} : vector<16x40xi32>
    %c40_i32 = arith.constant 40 : i32
    %6 = arith.muli %arg1, %c40_i32 : i32
    %7 = vector.broadcast %6 : i32 to vector<16x1xi32>
    %8 = arith.subi %4, %7 : vector<16x1xi32>
    %9 = vector.broadcast %8 : vector<16x1xi32> to vector<16x40xi32>
    %10 = arith.cmpi eq, %5, %9 : vector<16x40xi32>
    %cst = arith.constant 0.899999976 : f32
    %cst_4 = arith.constant 0.00256410264 : f32
    %11 = vector.broadcast %cst : f32 to vector<16x40xf32>
    %12 = vector.broadcast %cst_4 : f32 to vector<16x40xf32>
    %13 = arith.select %10, %11, %12 : vector<16x40xi1>, vector<16x40xf32>
    %14 = arith.mulf %3, %13 : vector<16x40xf32>
    %15 = tpu.iota {dimensions = array<i32: 0>} : vector<16x1xi32>
    %c16_i32 = arith.constant 16 : i32
    %16 = arith.muli %arg0, %c16_i32 : i32
    %c12_i32 = arith.constant 12 : i32
    %17 = arith.subi %c12_i32, %16 : i32
    %18 = vector.broadcast %17 : i32 to vector<16x1xi32>
    %19 = arith.cmpi slt, %15, %18 : vector<16x1xi32>
    %cst_5 = arith.constant 0.000000e+00 : f32
    %20 = vector.shape_cast %19 : vector<16x1xi1> to vector<16x1xi1>
    %21 = vector.broadcast %20 : vector<16x1xi1> to vector<16x40xi1>
    %22 = vector.broadcast %cst_5 : f32 to vector<16x40xf32>
    %23 = arith.select %21, %14, %22 : vector<16x40xi1>, vector<16x40xf32>
    %c0_6 = arith.constant 0 : index
    %c0_7 = arith.constant 0 : index
    %24 = vector.load %arg5[%c0_6, %c0_7] : memref<1x40xf32, #tpu.memory_space<vmem>>, vector<1x40xf32>
    %cst_8 = arith.constant dense<0.000000e+00> : vector<40xf32>
    %25 = vector.multi_reduction <add>, %23, %cst_8 [0] : vector<16x40xf32> to vector<40xf32>
    %26 = vector.shape_cast %25 : vector<40xf32> to vector<1x40xf32>
    %27 = arith.addf %24, %26 : vector<1x40xf32>
    %c0_9 = arith.constant 0 : index
    %c0_10 = arith.constant 0 : index
    %28 = vector.load %arg5[%c0_9, %c0_10] : memref<1x40xf32, #tpu.memory_space<vmem>>, vector<1x40xf32>
    tpu.vector_store %arg5[%c0_9, %c0_10], %27 {strides = array<i32>} : memref<1x40xf32, #tpu.memory_space<vmem>>, vector<1x40xf32>,
    %c0_i32_11 = arith.constant 0 : i32
    %29 = arith.cmpi eq, %arg1, %c0_i32_11 : i32
    %30 = arith.extui %29 : i1 to i32
    %c0_i32_12 = arith.constant 0 : i32
    %31 = arith.cmpi ne, %30, %c0_i32_12 : i32
    scf.if %31 {
      %c0_13 = arith.constant 0 : index
      %c0_14 = arith.constant 0 : index
      %32 = vector.load %arg5[%c0_13, %c0_14] : memref<1x40xf32, #tpu.memory_space<vmem>>, vector<1x40xf32>
      %33 = vector.shape_cast %32 : vector<1x40xf32> to vector<1x1x40xf32>
      %cst_15 = arith.constant dense<0.000000e+00> : vector<1xf32>
      %34 = vector.multi_reduction <add>, %33, %cst_15 [1, 2] : vector<1x1x40xf32> to vector<1xf32>
      %35 = vector.shape_cast %34 : vector<1xf32> to vector<1x1x1xf32>
      %36 = vector.extract %35[0, 0, 0] : f32 from vector<1x1x1xf32>
      %cst_16 = arith.constant 1.000000e+00 : f32
      %37 = arith.mulf %36, %cst_16 : f32
      %cst_17 = arith.constant 0.000000e+00 : f32
      %38 = vector.broadcast %cst_17 : f32 to vector<1x1xf32>
      %39 = vector.broadcast %37 : f32 to vector<1x1xf32>
      %40 = arith.addf %38, %39 : vector<1x1xf32>
      %c0_18 = arith.constant 0 : index
      %c0_19 = arith.constant 0 : index
      %41 = vector.load %arg4[%c0_18, %c0_19] : memref<1x1xf32, #tpu.memory_space<vmem>>, vector<1x1xf32>
      tpu.vector_store %arg4[%c0_18, %c0_19], %40 {strides = array<i32>} : memref<1x1xf32, #tpu.memory_space<vmem>>, vector<1x1xf32>,
    } else {
    }
    return
  }
  func.func @transform_0(%arg0: i32, %arg1: i32) -> (i32, i32) {
    %c0_i32 = arith.constant 0 : i32
    return %arg0, %arg1 : i32, i32
  }
  func.func @transform_1(%arg0: i32, %arg1: i32) -> (i32, i32) {
    %c0_i32 = arith.constant 0 : i32
    %c0_i32_0 = arith.constant 0 : i32
    return %arg0, %c0_i32 : i32, i32
  }
  func.func @transform_2(%arg0: i32, %arg1: i32) -> (i32, i32) {
    %c0_i32 = arith.constant 0 : i32
    %c0_i32_0 = arith.constant 0 : i32
    return %arg0, %c0_i32 : i32, i32
  }
}

</mosaic_0001>

<llo_original>
// kernel: tpu_custom_call.1
$region0: #{tpu_custom_call.1}
  #allocation0 [shape = 'u32[]', space=smem, size = 0x4, offset = 0x4, fixed_abs, tag = 'smem constant byte address 0x4 - core index']
  #allocation1 [shape = 'u32[144,128]{1,0:T(1,128)}', space=vmem, size = 0x12000, scoped, tag = 'internal scratch']
  #allocation2 [shape = 'f32[1,40]{1,0:T(1,128)}', space=vmem, size = 0x200, scoped, tag = 'scratch operand']
  %s0 = inlined_call_operand.vmem [shape: f32[12,40], index: 0, kind: input, shape index: {}]
  %s1 = inlined_call_operand.vmem [shape: s32[16,1], index: 1, kind: input, shape index: {}]
  %s2 = inlined_call_operand.hbm [shape: f32[1,1], index: 2, kind: output, shape index: {}]
  %s3 = sld [smem:[#allocation0]]
  $region26: #{tpu_custom_call.1} parent=0
    _
  %s5 = ssub.s32 1, %s3
  %s6 = scalar_select 0, %s5, %s3
  $region1: #{tpu_custom_call.1} parent=0
    #allocation3 [shape = 'u8[512]{0}', space=vmem, size = 0x400, scoped, tag = 'output window, operand 0, single buffered']
    #allocation4 [shape = 's32[1]{0}', space=sflag, size = 0x4, scoped, tag = 'scoped memory for tpu_custom_call.1']
    %7 = vsyncpa [#allocation4], 0
    // Predicated region
    $region2: #{tpu_custom_call.1} parent=1 // pred_check
      _
    $region3: #{tpu_custom_call.1} parent=1 // pred_check_branch
      %9 = sbr.rel (0) target = $region5
    $region4: #{tpu_custom_call.1} parent=1 // pred_region
      _
    $region5: #{tpu_custom_call.1} parent=1 // pred_fallthru
      _
    // Predicated region
    $region6: #{tpu_custom_call.1} parent=1 // pred_check
      _
    $region7: #{tpu_custom_call.1} parent=1 // pred_check_branch
      %11 = sbr.rel (0) target = $region9
    $region8: #{tpu_custom_call.1} parent=1 // pred_region
      _
    $region9: #{tpu_custom_call.1} parent=1 // pred_fallthru
      _
    %p12 = scmp.eq.s32.totalorder 0, 0
    // Predicated region
    $region10: #{tpu_custom_call.1} parent=1 // pred_check
      %p13 = pneg %p12
    $region11: #{tpu_custom_call.1} parent=1 // pred_check_branch
      %15 = sbr.rel (%p13) target = $region13
    $region12: #{tpu_custom_call.1} parent=1 // pred_region
      %vm16 = vcmask 319488
      %17 = vst.msk [vmem:[#allocation2] sm:$0x1] %vm16, 0.0
    $region13: #{tpu_custom_call.1} parent=1 // pred_fallthru
      _
    %v18 = vld [vmem:[%s0] sm:$0xff]
    %v19 = vld [vmem:[%s0 + $0x8] sm:$0xff]
    %v20 = vld [vmem:[%s1] sm:$0xff]
    %v21 = vld [vmem:[%s1 + $0x8] sm:$0xff]
    %v22 = vlaneseq
    %v23 = vand.u32 %v22, 127
    %s24 = smul.u32 0, 40
    %v25 = vstv %s24
    %v26 = vsub.s32 %v20, %v25
    %v27 = vsub.s32 %v21, %v25
    %28 = vset.pattern.permute.xlu0 0
    %29 = vperm.xlu0 %28, %v26
    %v30 = vpop.permute.xlu0 %29
    %31 = vset.pattern.permute.xlu0 0
    %32 = vperm.xlu0 %31, %v27
    %v33 = vpop.permute.xlu0 %32
    %vm34 = vcmp.eq.s32.totalorder %v23, %v30
    %vm35 = vcmp.eq.s32.totalorder %v23, %v33
    %v36 = vsel %vm34, 0.9, 0.0025641026
    %v37 = vsel %vm35, 0.9, 0.0025641026
    %v38 = vmul.f32 %v18, %v36
    %v39 = vmul.f32 %v19, %v37
    %v40 = vlaneseq
    %v41 = vshrl.u32 %v40, 7
    %v42 = vadd.s32 %v41, 8
    %s43 = smul.u32 0, 16
    %s44 = ssub.s32 12, %s43
    %v45 = vstv %s44
    %vm46 = vcmp.lt.s32.totalorder %v41, %v45
    %vm47 = vcmp.lt.s32.totalorder %v42, %v45
    %v48 = vsel %vm46, 1, 0
    %v49 = vsel %vm47, 1, 0
    %vm50 = vcmp.eq.s32.totalorder %v48, 1
    %vm51 = vcmp.eq.s32.totalorder %v49, 1
    %v52 = vsel %vm50, %v38, 0.0
    %v53 = vsel %vm51, %v39, 0.0
    %v54 = vld [vmem:[#allocation2] sm:$0x1]
    %vm55 = vcmask 326656
    %v56 = vsel %vm55, %v52, 0.0
    %v57 = vsel %vm55, %v53, 0.0
    %v58 = vadd.f32 %v56, %v57
    %v59 = vrot.slane %v58, 4
    %v60 = vadd.f32 %v58, %v59
    %v61 = vrot.slane %v60, 2
    %v62 = vadd.f32 %v60, %v61
    %v63 = vrot.slane %v62, 1
    %v64 = vadd.f32 %v62, %v63
    %v65 = vadd.f32 %v54, %v64
    %vm66 = vcmask 319488
    %67 = vst.msk [vmem:[#allocation2] sm:$0x1] %vm66, %v65
    // Predicated region
    $region14: #{tpu_custom_call.1} parent=1 // pred_check
      %p68 = pneg %p12
    $region15: #{tpu_custom_call.1} parent=1 // pred_check_branch
      %70 = sbr.rel (%p68) target = $region17
    $region16: #{tpu_custom_call.1} parent=1 // pred_region
      %v71 = vld [vmem:[#allocation2] sm:$0x1]
      %v72 = vsel %vm66, %v71, 0.0
      %73 = vadd.xlane.f32.xlu0 %v72
      %v74 = vpop.xlane.xlu0 %73
      %v75 = vrot.slane %v74, 4
      %v76 = vadd.f32 %v74, %v75
      %v77 = vrot.slane %v76, 2
      %v78 = vadd.f32 %v76, %v77
      %v79 = vrot.slane %v78, 1
      %v80 = vadd.f32 %v78, %v79
      %s81 = vtos %v80
      %v82 = vstv %s81
      %v83 = vadd.f32 %v82, 0.0
      %vm84 = vcmask 0
      %85 = vst.msk [vmem:[#allocation3] sm:$0x1] %vm84, %v83
    $region17: #{tpu_custom_call.1} parent=1 // pred_fallthru
      _
    // Predicated region
    $region18: #{tpu_custom_call.1} parent=1 // pred_check
      _
    $region19: #{tpu_custom_call.1} parent=1 // pred_check_branch
      %87 = sbr.rel (0) target = $region21
    $region20: #{tpu_custom_call.1} parent=1 // pred_region
      %s89 = ssub.s32 16, 16
      %90 = vsyncadd [#allocation4], %s89
      %s92 = sshll.u32 [#allocation3], 4
      %s93 = int_to_ptr.vmem [resolvable:$true] %s92
      %95 = dma.vmem_to_hbm [thread:$0]  %s93, 16, %s2, [#allocation4]
    $region21: #{tpu_custom_call.1} parent=1 // pred_fallthru
      _
    // Predicated region
    $region22: #{tpu_custom_call.1} parent=1 // pred_check
      _
    $region23: #{tpu_custom_call.1} parent=1 // pred_check_branch
      %97 = sbr.rel (0) target = $region25
    $region24: #{tpu_custom_call.1} parent=1 // pred_region
      %98 = dma.done [#allocation4], 16
    $region25: #{tpu_custom_call.1} parent=1 // pred_fallthru
      _
    %99 = vsyncpa [#allocation4], 1

</llo_original>
